<compile_context>
chip_gen: v7x
topology: tpu7x:2x2x1
jax: 0.10.0
libtpu: 0.0.40
codegen_flags: <defaults>
</compile_context>

<pallas_src>
import functools

import jax
import jax.numpy as jnp
from jax.experimental import pallas as pl
from jax.experimental.pallas import tpu as pltpu

_LANE = 128
_HIDDEN = 128


def _round_up(n, m):
    return ((n + m - 1) // m) * m


def _num_tensorcores():
    """Best-effort detection of TensorCores per device (megacore chips)."""
    try:
        kind = (getattr(jax.devices()[0], "device_kind", "") or "").lower()
        if any(tag in kind for tag in ("v4", "v5p", "v7", "tpu7")):
            return 2
    except Exception:
        pass
    return 1


def _decoder_kernel(t_ref, w1_ref, b1_ref, w2_ref, b2_ref, o_ref):
    """Fused 2-layer MLP in batch-on-lanes layout.

    t_ref : (K, tb)        w1_ref : (128, K)   b1_ref : (128, 1)
    o_ref : (n_y, tb)      w2_ref : (n_y, 128) b2_ref : (n_y, 1)
    """
    t = t_ref[...].astype(jnp.float32)
    # K is tiny (e.g. 2) so this under-fills the MXU, but the VPU alternative
    # (per-k lane-broadcast of a (128,1) column into (128,tb)) costs more
    # vreg traffic than one short MXU pass, so we keep jnp.dot here.
    h = jnp.dot(w1_ref[...].astype(jnp.float32), t,
                preferred_element_type=jnp.float32) + b1_ref[...]
    h = jnp.maximum(h, 0.0)
    out = jnp.dot(w2_ref[...].astype(jnp.float32), h,
                  preferred_element_type=jnp.float32) + b2_ref[...]
    o_ref[...] = out.astype(o_ref.dtype)


@functools.partial(jax.jit, static_argnames=("block_b",))
def deterministic_decoder(t, params, *, block_b=2048):
    """Pallas implementation of Deterministic_decoder.forward.

    t       : (..., K) bottleneck samples
    params  : dict with w1 (128,K), b1 (128,1), w2 (n_y,128), b2 (n_y,1)
              (PyTorch-native weight layout; see init_params / prepare_params)
    returns : logits_y = squeeze(relu(t @ W1.T + b1) @ W2.T + b2)
    """
    w1, b1 = params["w1"], params["b1"]
    w2, b2 = params["w2"], params["b2"]

    k_dim = w1.shape[1]
    n_y = w2.shape[0]

    t2d = t.reshape(-1, k_dim)
    batch = t2d.shape[0]

    # Batch on lanes: pass t as (K, B).  This is a tiny O(B*K) transpose in
    # the wrapper and removes the 128x output-write inflation of the old
    # (B, 128)-padded layout.
    tT = t2d.T

    num_tc = _num_tensorcores()
    blk = _round_up(block_b, _LANE)
    if batch > blk:
        # Large batch: big fixed tiles (few grid steps, long MXU passes).
        tb = blk
    elif num_tc >= 2 and batch > _LANE:
        # Mid-size batch on a megacore chip: >=2 grid steps so both
        # TensorCores get work under dimension_semantics=("parallel",).
        tb = min(blk, max(_LANE, _round_up(-(-batch // 2), _LANE)))
    else:
        # Small/mid batch: one tile covering the whole batch — no padding at
        # all (block lane dim == full array dim is allowed).
        tb = batch

    padded_b = _round_up(batch, tb)
    if padded_b != batch:  # tail-only pad, only for multi-step grids
        tT = jnp.pad(tT, ((0, 0), (0, padded_b - batch)))

    grid = (padded_b // tb,)

    out_t = pl.pallas_call(
        _decoder_kernel,
        out_shape=jax.ShapeDtypeStruct((n_y, padded_b), t2d.dtype),
        grid_spec=pltpu.PrefetchScalarGridSpec(
            num_scalar_prefetch=0,
            grid=grid,
            in_specs=[
                pl.BlockSpec((k_dim, tb), lambda i: (0, i)),        # tT tile
                pl.BlockSpec((_HIDDEN, k_dim), lambda i: (0, 0)),   # W1
                pl.BlockSpec((_HIDDEN, 1), lambda i: (0, 0)),       # b1
                pl.BlockSpec((n_y, _HIDDEN), lambda i: (0, 0)),     # W2
                pl.BlockSpec((n_y, 1), lambda i: (0, 0)),           # b2
            ],
            out_specs=pl.BlockSpec((n_y, tb), lambda i: (0, i)),
        ),
        compiler_params=pltpu.CompilerParams(
            dimension_semantics=("parallel",),
        ),
    )(tT, w1, b1, w2, b2)

    if padded_b != batch:
        out_t = out_t[:, :batch]

    out = out_t.T.reshape(t.shape[:-1] + (n_y,))
    # torch .squeeze(): drop all size-1 dims.
    return jnp.squeeze(out)


def prepare_params(w1, b1, w2, b2):
    """One-time conversion of torch-style params into kernel layout.

    Accepts W1 (128,K) or (K,128), W2 (n_y,128) or (128,n_y), biases of any
    of (n,), (1,n), (n,1).  Call once; do NOT put this in the per-step path.
    """
    w1 = jnp.asarray(w1)
    w2 = jnp.asarray(w2)
    if w1.shape[0] != _HIDDEN:
        w1 = w1.T                     # -> (128, K)
    if w2.shape[1] != _HIDDEN:
        w2 = w2.T                     # -> (n_y, 128)
    b1 = jnp.asarray(b1).reshape(_HIDDEN, 1)
    b2 = jnp.asarray(b2).reshape(w2.shape[0], 1)
    return {"w1": w1, "b1": b1, "w2": w2, "b2": b2}


def init_params(key, k_dim, n_y, dtype=jnp.float32):
    """Torch nn.Linear default init U(-1/sqrt(fan_in), +1/sqrt(fan_in)),
    built directly in kernel layout (PyTorch-native weight orientation):
        w1: (128, K),  b1: (128, 1),  w2: (n_y, 128),  b2: (n_y, 1)
    """
    keys = jax.random.split(key, 4)

    def linear(kw, kb, fan_in, fan_out):
        bound = 1.0 / (fan_in ** 0.5)
        w = jax.random.uniform(kw, (fan_out, fan_in), dtype, -bound, bound)
        b = jax.random.uniform(kb, (fan_out, 1), dtype, -bound, bound)
        return w, b

    w1, b1 = linear(keys[0], keys[1], k_dim, _HIDDEN)
    w2, b2 = linear(keys[2], keys[3], _HIDDEN, n_y)
    return {"w1": w1, "b1": b1, "w2": w2, "b2": b2}


def reference_forward(t, params):
    """Pure-JAX reference of the PyTorch forward pass."""
    k_dim = params["w1"].shape[1]
    n_y = params["w2"].shape[0]
    x = t.reshape(-1, k_dim)
    h = jnp.maximum(x @ params["w1"].T + params["b1"].T, 0.0)
    out = h @ params["w2"].T + params["b2"].T
    return jnp.squeeze(out.reshape(t.shape[:-1] + (n_y,)))


if __name__ == "__main__":
    # Housing-style shapes: K=2 bottleneck, n_y=1 output.
    K, N_Y = 2, 1

    key = jax.random.PRNGKey(0)
    k_t, k_p, k_t2 = jax.random.split(key, 3)

    params = init_params(k_p, K, N_Y)

    # Small batch (single un-padded tile path).
    t_small = jax.random.normal(k_t, (8, K), dtype=jnp.float32)
    y_small = jax.block_until_ready(deterministic_decoder(t_small, params))
    r_small = reference_forward(t_small, params)
    assert y_small.shape == r_small.shape == (8,), (y_small.shape, r_small.shape)
    assert jnp.allclose(y_small, r_small, atol=1e-5, rtol=1e-5), "small-batch mismatch"

    # Unaligned mid batch (exercises tiling / tail handling paths).
    t_mid = jax.random.normal(k_t2, (300, K), dtype=jnp.float32)
    y_mid = jax.block_until_ready(deterministic_decoder(t_mid, params))
    r_mid = reference_forward(t_mid, params)
    assert y_mid.shape == r_mid.shape == (300,), (y_mid.shape, r_mid.shape)
    assert jnp.allclose(y_mid, r_mid, atol=1e-5, rtol=1e-5), "mid-batch mismatch"

    print("KERNEL_OK")
</pallas_src>

<mosaic_0001>
module attributes {stable_mosaic.version = 11 : i64} {
  func.func @_decoder_kernel(%arg0: i32, %arg1: memref<2x8xf32, #tpu.memory_space<vmem>>, %arg2: memref<128x2xf32, #tpu.memory_space<vmem>>, %arg3: memref<128x1xf32, #tpu.memory_space<vmem>>, %arg4: memref<1x128xf32, #tpu.memory_space<vmem>>, %arg5: memref<1x1xf32, #tpu.memory_space<vmem>>, %arg6: memref<1x8xf32, #tpu.memory_space<vmem>>) attributes {dimension_semantics = [#tpu.dimension_semantics<parallel>], iteration_bounds = array<i64: 1>, scalar_prefetch = 0 : i64, scratch_operands = 0 : i64, tpu.core_type = #tpu.core_type<tc>, window_params = [{transform_indices = @transform_0, window_bounds = array<i64: 2, 8>}, {pipeline_mode = #tpu.pipeline_mode<synchronous>, transform_indices = @transform_1, window_bounds = array<i64: 128, 2>}, {pipeline_mode = #tpu.pipeline_mode<synchronous>, transform_indices = @transform_2, window_bounds = array<i64: 128, 1>}, {pipeline_mode = #tpu.pipeline_mode<synchronous>, transform_indices = @transform_3, window_bounds = array<i64: 1, 128>}, {pipeline_mode = #tpu.pipeline_mode<synchronous>, transform_indices = @transform_4, window_bounds = array<i64: 1, 1>}, {transform_indices = @transform_5, window_bounds = array<i64: 1, 8>}]} {
    %c0 = arith.constant 0 : index
    %c0_0 = arith.constant 0 : index
    %0 = vector.load %arg1[%c0, %c0_0] : memref<2x8xf32, #tpu.memory_space<vmem>>, vector<2x8xf32>
    %c0_1 = arith.constant 0 : index
    %c0_2 = arith.constant 0 : index
    %1 = vector.load %arg2[%c0_1, %c0_2] : memref<128x2xf32, #tpu.memory_space<vmem>>, vector<128x2xf32>
    %cst = arith.constant dense<0.000000e+00> : vector<128x8xf32>
    %2 = tpu.matmul %1, %0, %cst {dimension_numbers = #tpu.dot_dimension_numbers<[1], [0], [0], [1], [0, 0, 1, 1], [], []>} : vector<128x2xf32>, vector<2x8xf32>, vector<128x8xf32> -> vector<128x8xf32>
    %c0_3 = arith.constant 0 : index
    %c0_4 = arith.constant 0 : index
    %3 = vector.load %arg3[%c0_3, %c0_4] : memref<128x1xf32, #tpu.memory_space<vmem>>, vector<128x1xf32>
    %4 = vector.broadcast %3 : vector<128x1xf32> to vector<128x8xf32>
    %5 = arith.addf %2, %4 : vector<128x8xf32>
    %cst_5 = arith.constant 0.000000e+00 : f32
    %6 = vector.broadcast %cst_5 : f32 to vector<128x8xf32>
    %7 = arith.maximumf %5, %6 : vector<128x8xf32>
    %c0_6 = arith.constant 0 : index
    %c0_7 = arith.constant 0 : index
    %8 = vector.load %arg4[%c0_6, %c0_7] : memref<1x128xf32, #tpu.memory_space<vmem>>, vector<1x128xf32>
    %cst_8 = arith.constant dense<0.000000e+00> : vector<1x8xf32>
    %9 = tpu.matmul %8, %7, %cst_8 {dimension_numbers = #tpu.dot_dimension_numbers<[1], [0], [0], [1], [0, 0, 1, 1], [], []>} : vector<1x128xf32>, vector<128x8xf32>, vector<1x8xf32> -> vector<1x8xf32>
    %c0_9 = arith.constant 0 : index
    %c0_10 = arith.constant 0 : index
    %10 = vector.load %arg5[%c0_9, %c0_10] : memref<1x1xf32, #tpu.memory_space<vmem>>, vector<1x1xf32>
    %11 = vector.broadcast %10 : vector<1x1xf32> to vector<1x8xf32>
    %12 = arith.addf %9, %11 : vector<1x8xf32>
    %c0_11 = arith.constant 0 : index
    %c0_12 = arith.constant 0 : index
    %13 = vector.load %arg6[%c0_11, %c0_12] : memref<1x8xf32, #tpu.memory_space<vmem>>, vector<1x8xf32>
    tpu.vector_store %arg6[%c0_11, %c0_12], %12 {strides = array<i32>} : memref<1x8xf32, #tpu.memory_space<vmem>>, vector<1x8xf32>,
    return
  }
  func.func @transform_0(%arg0: i32) -> (i32, i32) {
    %c0_i32 = arith.constant 0 : i32
    %c0_i32_0 = arith.constant 0 : i32
    return %c0_i32, %arg0 : i32, i32
  }
  func.func @transform_1(%arg0: i32) -> (i32, i32) {
    %c0_i32 = arith.constant 0 : i32
    %c0_i32_0 = arith.constant 0 : i32
    %c0_i32_1 = arith.constant 0 : i32
    return %c0_i32, %c0_i32_0 : i32, i32
  }
  func.func @transform_2(%arg0: i32) -> (i32, i32) {
    %c0_i32 = arith.constant 0 : i32
    %c0_i32_0 = arith.constant 0 : i32
    %c0_i32_1 = arith.constant 0 : i32
    return %c0_i32, %c0_i32_0 : i32, i32
  }
  func.func @transform_3(%arg0: i32) -> (i32, i32) {
    %c0_i32 = arith.constant 0 : i32
    %c0_i32_0 = arith.constant 0 : i32
    %c0_i32_1 = arith.constant 0 : i32
    return %c0_i32, %c0_i32_0 : i32, i32
  }
  func.func @transform_4(%arg0: i32) -> (i32, i32) {
    %c0_i32 = arith.constant 0 : i32
    %c0_i32_0 = arith.constant 0 : i32
    %c0_i32_1 = arith.constant 0 : i32
    return %c0_i32, %c0_i32_0 : i32, i32
  }
  func.func @transform_5(%arg0: i32) -> (i32, i32) {
    %c0_i32 = arith.constant 0 : i32
    %c0_i32_0 = arith.constant 0 : i32
    return %c0_i32, %arg0 : i32, i32
  }
}

</mosaic_0001>

<llo_original>
// kernel: deterministic_decoder.1
$region0: #{deterministic_decoder.1}
  #allocation0 [shape = 'u32[]', space=smem, size = 0x4, offset = 0x4, fixed_abs, tag = 'smem constant byte address 0x4 - core index']
  #allocation1 [shape = 'u32[144,128]{1,0:T(1,128)}', space=vmem, size = 0x12000, scoped, tag = 'internal scratch']
  #allocation2 [shape = 'f32[1,1]{1,0:T(1,128)S(1)}', space=vmem, size = 0x200, scoped, tag = 'scoped memory for deterministic_decoder.1']
  %s0 = inlined_call_operand.vmem [shape: f32[2,8], index: 0, kind: input, shape index: {}]
  %s1 = inlined_call_operand.vmem [shape: f32[128,2], index: 1, kind: input, shape index: {}]
  %s2 = inlined_call_operand.vmem [shape: f32[128,1], index: 2, kind: input, shape index: {}]
  %s3 = inlined_call_operand.vmem [shape: f32[1,128], index: 3, kind: input, shape index: {}]
  %s4 = inlined_call_operand.<no memory space> [shape: f32[1,1], index: 4, kind: input, shape index: {}]
  %s5 = inlined_call_operand.hbm [shape: f32[1,8], index: 5, kind: output, shape index: {}]
  %s6 = sld [smem:[#allocation0]]
  $region30: #{deterministic_decoder.1} parent=0
    _
  %s8 = ssub.s32 1, %s6
  %s9 = scalar_select 0, %s8, %s6
  %v10 = vstv %s4
  %11 = vst [vmem:[#allocation2] sm:$0x1] %v10
  $region1: #{deterministic_decoder.1} parent=0
    #allocation3 [shape = 'u8[512]{0}', space=vmem, size = 0x400, scoped, tag = 'output window, operand 0, single buffered']
    #allocation4 [shape = 's32[1]{0}', space=sflag, size = 0x4, scoped, tag = 'scoped memory for deterministic_decoder.1']
    %12 = vsyncpa [#allocation4], 0
    // Predicated region
    $region2: #{deterministic_decoder.1} parent=1 // pred_check
      _
    $region3: #{deterministic_decoder.1} parent=1 // pred_check_branch
      %14 = sbr.rel (0) target = $region5
    $region4: #{deterministic_decoder.1} parent=1 // pred_region
      _
    $region5: #{deterministic_decoder.1} parent=1 // pred_fallthru
      _
    // Predicated region
    $region6: #{deterministic_decoder.1} parent=1 // pred_check
      _
    $region7: #{deterministic_decoder.1} parent=1 // pred_check_branch
      %16 = sbr.rel (0) target = $region9
    $region8: #{deterministic_decoder.1} parent=1 // pred_region
      _
    $region9: #{deterministic_decoder.1} parent=1 // pred_fallthru
      _
    // Predicated region
    $region10: #{deterministic_decoder.1} parent=1 // pred_check
      _
    $region11: #{deterministic_decoder.1} parent=1 // pred_check_branch
      %18 = sbr.rel (0) target = $region13
    $region12: #{deterministic_decoder.1} parent=1 // pred_region
      _
    $region13: #{deterministic_decoder.1} parent=1 // pred_fallthru
      _
    // Predicated region
    $region14: #{deterministic_decoder.1} parent=1 // pred_check
      _
    $region15: #{deterministic_decoder.1} parent=1 // pred_check_branch
      %20 = sbr.rel (0) target = $region17
    $region16: #{deterministic_decoder.1} parent=1 // pred_region
      _
    $region17: #{deterministic_decoder.1} parent=1 // pred_fallthru
      _
    // Predicated region
    $region18: #{deterministic_decoder.1} parent=1 // pred_check
      _
    $region19: #{deterministic_decoder.1} parent=1 // pred_check_branch
      %22 = sbr.rel (0) target = $region21
    $region20: #{deterministic_decoder.1} parent=1 // pred_region
      _
    $region21: #{deterministic_decoder.1} parent=1 // pred_fallthru
      _
    %v23 = vld [vmem:[%s0] sm:$0x3]
    %v24 = vld [vmem:[%s1] sm:$0xff]
    %v25 = vld [vmem:[%s1 + $0x8] sm:$0xff]
    %v26 = vld [vmem:[%s1 + $0x10] sm:$0xff]
    %v27 = vld [vmem:[%s1 + $0x18] sm:$0xff]
    %v28 = vld [vmem:[%s1 + $0x20] sm:$0xff]
    %v29 = vld [vmem:[%s1 + $0x28] sm:$0xff]
    %v30 = vld [vmem:[%s1 + $0x30] sm:$0xff]
    %v31 = vld [vmem:[%s1 + $0x38] sm:$0xff]
    %v32 = vld [vmem:[%s1 + $0x40] sm:$0xff]
    %v33 = vld [vmem:[%s1 + $0x48] sm:$0xff]
    %v34 = vld [vmem:[%s1 + $0x50] sm:$0xff]
    %v35 = vld [vmem:[%s1 + $0x58] sm:$0xff]
    %v36 = vld [vmem:[%s1 + $0x60] sm:$0xff]
    %v37 = vld [vmem:[%s1 + $0x68] sm:$0xff]
    %v38 = vld [vmem:[%s1 + $0x70] sm:$0xff]
    %v39 = vld [vmem:[%s1 + $0x78] sm:$0xff]
    %v40 = vld [vmem:[%s2] sm:$0xff]
    %v41 = vld [vmem:[%s2 + $0x8] sm:$0xff]
    %v42 = vld [vmem:[%s2 + $0x10] sm:$0xff]
    %v43 = vld [vmem:[%s2 + $0x18] sm:$0xff]
    %v44 = vld [vmem:[%s2 + $0x20] sm:$0xff]
    %v45 = vld [vmem:[%s2 + $0x28] sm:$0xff]
    %v46 = vld [vmem:[%s2 + $0x30] sm:$0xff]
    %v47 = vld [vmem:[%s2 + $0x38] sm:$0xff]
    %v48 = vld [vmem:[%s2 + $0x40] sm:$0xff]
    %v49 = vld [vmem:[%s2 + $0x48] sm:$0xff]
    %v50 = vld [vmem:[%s2 + $0x50] sm:$0xff]
    %v51 = vld [vmem:[%s2 + $0x58] sm:$0xff]
    %v52 = vld [vmem:[%s2 + $0x60] sm:$0xff]
    %v53 = vld [vmem:[%s2 + $0x68] sm:$0xff]
    %v54 = vld [vmem:[%s2 + $0x70] sm:$0xff]
    %v55 = vld [vmem:[%s2 + $0x78] sm:$0xff]
    %57 = vset.pattern.permute.xlu0 0
    %58 = vperm.xlu0 %57, %v40
    %v59 = vpop.permute.xlu0 %58
    %62 = vset.pattern.permute.xlu0 0
    %63 = vperm.xlu0 %62, %v41
    %v64 = vpop.permute.xlu0 %63
    %67 = vset.pattern.permute.xlu0 0
    %68 = vperm.xlu0 %67, %v42
    %v69 = vpop.permute.xlu0 %68
    %72 = vset.pattern.permute.xlu0 0
    %73 = vperm.xlu0 %72, %v43
    %v74 = vpop.permute.xlu0 %73
    %77 = vset.pattern.permute.xlu0 0
    %78 = vperm.xlu0 %77, %v44
    %v79 = vpop.permute.xlu0 %78
    %82 = vset.pattern.permute.xlu0 0
    %83 = vperm.xlu0 %82, %v45
    %v84 = vpop.permute.xlu0 %83
    %87 = vset.pattern.permute.xlu0 0
    %88 = vperm.xlu0 %87, %v46
    %v89 = vpop.permute.xlu0 %88
    %92 = vset.pattern.permute.xlu0 0
    %93 = vperm.xlu0 %92, %v47
    %v94 = vpop.permute.xlu0 %93
    %97 = vset.pattern.permute.xlu0 0
    %98 = vperm.xlu0 %97, %v48
    %v99 = vpop.permute.xlu0 %98
    %102 = vset.pattern.permute.xlu0 0
    %103 = vperm.xlu0 %102, %v49
    %v104 = vpop.permute.xlu0 %103
    %107 = vset.pattern.permute.xlu0 0
    %108 = vperm.xlu0 %107, %v50
    %v109 = vpop.permute.xlu0 %108
    %112 = vset.pattern.permute.xlu0 0
    %113 = vperm.xlu0 %112, %v51
    %v114 = vpop.permute.xlu0 %113
    %117 = vset.pattern.permute.xlu0 0
    %118 = vperm.xlu0 %117, %v52
    %v119 = vpop.permute.xlu0 %118
    %122 = vset.pattern.permute.xlu0 0
    %123 = vperm.xlu0 %122, %v53
    %v124 = vpop.permute.xlu0 %123
    %127 = vset.pattern.permute.xlu0 0
    %128 = vperm.xlu0 %127, %v54
    %v129 = vpop.permute.xlu0 %128
    %132 = vset.pattern.permute.xlu0 0
    %133 = vperm.xlu0 %132, %v55
    %v134 = vpop.permute.xlu0 %133
    %vm136 = vcmask 15360
    %v138 = vsel %vm136, %v24, 0
    %v141 = vsel %vm136, %v25, 0
    %v144 = vsel %vm136, %v26, 0
    %v147 = vsel %vm136, %v27, 0
    %v150 = vsel %vm136, %v28, 0
    %v153 = vsel %vm136, %v29, 0
    %v156 = vsel %vm136, %v30, 0
    %v159 = vsel %vm136, %v31, 0
    %v162 = vsel %vm136, %v32, 0
    %v165 = vsel %vm136, %v33, 0
    %v168 = vsel %vm136, %v34, 0
    %v171 = vsel %vm136, %v35, 0
    %v174 = vsel %vm136, %v36, 0
    %v177 = vsel %vm136, %v37, 0
    %v180 = vsel %vm136, %v38, 0
    %v183 = vsel %vm136, %v39, 0
    %vm185 = vcmask 1041408
    %v187 = vsel %vm185, %v23, 0
    %189 = vmatprep.subr.mxu0 0.0
    %190 = vmatpush1.msra.mxu0 %v187
    %191 = vmatprep.subr.mxu0 0.0
    %192 = vmatpush1.msra.mxu0 0.0
    %193 = vmatprep.subr.mxu0 0.0
    %194 = vmatpush1.msra.mxu0 0.0
    %195 = vmatprep.subr.mxu0 0.0
    %196 = vmatpush1.msra.mxu0 0.0
    %197 = vmatprep.subr.mxu0 0.0
    %198 = vmatpush1.msra.mxu0 0.0
    %199 = vmatprep.subr.mxu0 0.0
    %200 = vmatpush1.msra.mxu0 0.0
    %201 = vmatprep.subr.mxu0 0.0
    %202 = vmatpush1.msra.mxu0 0.0
    %203 = vmatprep.subr.mxu0 0.0
    %204 = vmatpush1.msra.mxu0 0.0
    %205 = vmatprep.subr.mxu0 0.0
    %206 = vmatpush1.msra.mxu0 0.0
    %207 = vmatprep.subr.mxu0 0.0
    %208 = vmatpush1.msra.mxu0 0.0
    %209 = vmatprep.subr.mxu0 0.0
    %210 = vmatpush1.msra.mxu0 0.0
    %211 = vmatprep.subr.mxu0 0.0
    %212 = vmatpush1.msra.mxu0 0.0
    %213 = vmatprep.subr.mxu0 0.0
    %214 = vmatpush1.msra.mxu0 0.0
    %215 = vmatprep.subr.mxu0 0.0
    %216 = vmatpush1.msra.mxu0 0.0
    %217 = vmatprep.subr.mxu0 0.0
    %218 = vmatpush1.msra.mxu0 0.0
    %219 = vmatprep.subr.mxu0 0.0
    %220 = vmatpush1.msra.mxu0 0.0
    %221 = vmatprep.subr.mxu0 0.0
    %222 = vmatpush1.msra.mxu0 0.0
    %223 = vmatprep.subr.mxu0 0.0
    %224 = vmatpush1.msra.mxu0 0.0
    %225 = vmatprep.subr.mxu0 0.0
    %226 = vmatpush1.msra.mxu0 0.0
    %227 = vmatprep.subr.mxu0 0.0
    %228 = vmatpush1.msra.mxu0 0.0
    %229 = vmatprep.subr.mxu0 0.0
    %230 = vmatpush1.msra.mxu0 0.0
    %231 = vmatprep.subr.mxu0 0.0
    %232 = vmatpush1.msra.mxu0 0.0
    %233 = vmatprep.subr.mxu0 0.0
    %234 = vmatpush1.msra.mxu0 0.0
    %235 = vmatprep.subr.mxu0 0.0
    %236 = vmatpush1.msra.mxu0 0.0
    %237 = vmatprep.subr.mxu0 0.0
    %238 = vmatpush1.msra.mxu0 0.0
    %239 = vmatprep.subr.mxu0 0.0
    %240 = vmatpush1.msra.mxu0 0.0
    %241 = vmatprep.subr.mxu0 0.0
    %242 = vmatpush1.msra.mxu0 0.0
    %243 = vmatprep.subr.mxu0 0.0
    %244 = vmatpush1.msra.mxu0 0.0
    %245 = vmatprep.subr.mxu0 0.0
    %246 = vmatpush1.msra.mxu0 0.0
    %247 = vmatprep.subr.mxu0 0.0
    %248 = vmatpush1.msra.mxu0 0.0
    %249 = vmatprep.subr.mxu0 0.0
    %250 = vmatpush1.msra.mxu0 0.0
    %251 = vmatprep.subr.mxu0 0.0
    %252 = vmatpush1.msra.mxu0 0.0
    %253 = vmatprep.mubr.f32.mxu0 0.0
    %254 = vmatmul.mubr.f32.gmra.mrb[0].mxu0 %v138
    %v255 = vpop.f32.mrb[0].mxu0
    %v256 = vadd.f32 %v59, %v255
    %v257 = vpop.f32.mrb[0].mxu0
    %258 = vmatprep.mubr.f32.mxu0 0.0
    %259 = vmatmul.mubr.f32.gmra.mrb[0].mxu0 %v141
    %v260 = vpop.f32.mrb[0].mxu0
    %v261 = vadd.f32 %v64, %v260
    %v262 = vpop.f32.mrb[0].mxu0
    %263 = vmatprep.mubr.f32.mxu0 0.0
    %264 = vmatmul.mubr.f32.gmra.mrb[0].mxu0 %v144
    %v265 = vpop.f32.mrb[0].mxu0
    %v266 = vadd.f32 %v69, %v265
    %v267 = vpop.f32.mrb[0].mxu0
    %268 = vmatprep.mubr.f32.mxu0 0.0
    %269 = vmatmul.mubr.f32.gmra.mrb[0].mxu0 %v147
    %v270 = vpop.f32.mrb[0].mxu0
    %v271 = vadd.f32 %v74, %v270
    %v272 = vpop.f32.mrb[0].mxu0
    %273 = vmatprep.mubr.f32.mxu0 0.0
    %274 = vmatmul.mubr.f32.gmra.mrb[0].mxu0 %v150
    %v275 = vpop.f32.mrb[0].mxu0
    %v276 = vadd.f32 %v79, %v275
    %v277 = vpop.f32.mrb[0].mxu0
    %278 = vmatprep.mubr.f32.mxu0 0.0
    %279 = vmatmul.mubr.f32.gmra.mrb[0].mxu0 %v153
    %v280 = vpop.f32.mrb[0].mxu0
    %v281 = vadd.f32 %v84, %v280
    %v282 = vpop.f32.mrb[0].mxu0
    %283 = vmatprep.mubr.f32.mxu0 0.0
    %284 = vmatmul.mubr.f32.gmra.mrb[0].mxu0 %v156
    %v285 = vpop.f32.mrb[0].mxu0
    %v286 = vadd.f32 %v89, %v285
    %v287 = vpop.f32.mrb[0].mxu0
    %288 = vmatprep.mubr.f32.mxu0 0.0
    %289 = vmatmul.mubr.f32.gmra.mrb[0].mxu0 %v159
    %v290 = vpop.f32.mrb[0].mxu0
    %v291 = vadd.f32 %v94, %v290
    %v292 = vpop.f32.mrb[0].mxu0
    %293 = vmatprep.mubr.f32.mxu0 0.0
    %294 = vmatmul.mubr.f32.gmra.mrb[0].mxu0 %v162
    %v295 = vpop.f32.mrb[0].mxu0
    %v296 = vadd.f32 %v99, %v295
    %v297 = vpop.f32.mrb[0].mxu0
    %298 = vmatprep.mubr.f32.mxu0 0.0
    %299 = vmatmul.mubr.f32.gmra.mrb[0].mxu0 %v165
    %v300 = vpop.f32.mrb[0].mxu0
    %v301 = vadd.f32 %v104, %v300
    %v302 = vpop.f32.mrb[0].mxu0
    %303 = vmatprep.mubr.f32.mxu0 0.0
    %304 = vmatmul.mubr.f32.gmra.mrb[0].mxu0 %v168
    %v305 = vpop.f32.mrb[0].mxu0
    %v306 = vadd.f32 %v109, %v305
    %v307 = vpop.f32.mrb[0].mxu0
    %308 = vmatprep.mubr.f32.mxu0 0.0
    %309 = vmatmul.mubr.f32.gmra.mrb[0].mxu0 %v171
    %v310 = vpop.f32.mrb[0].mxu0
    %v311 = vadd.f32 %v114, %v310
    %v312 = vpop.f32.mrb[0].mxu0
    %313 = vmatprep.mubr.f32.mxu0 0.0
    %314 = vmatmul.mubr.f32.gmra.mrb[0].mxu0 %v174
    %v315 = vpop.f32.mrb[0].mxu0
    %v316 = vadd.f32 %v119, %v315
    %v317 = vpop.f32.mrb[0].mxu0
    %318 = vmatprep.mubr.f32.mxu0 0.0
    %319 = vmatmul.mubr.f32.gmra.mrb[0].mxu0 %v177
    %v320 = vpop.f32.mrb[0].mxu0
    %v321 = vadd.f32 %v124, %v320
    %v322 = vpop.f32.mrb[0].mxu0
    %323 = vmatprep.mubr.f32.mxu0 0.0
    %324 = vmatmul.mubr.f32.gmra.mrb[0].mxu0 %v180
    %v325 = vpop.f32.mrb[0].mxu0
    %v326 = vadd.f32 %v129, %v325
    %v327 = vpop.f32.mrb[0].mxu0
    %328 = vmatprep.mubr.f32.mxu0 0.0
    %329 = vmatmul.mubr.f32.gmra.mrb[0].mxu0 %v183
    %v330 = vpop.f32.mrb[0].mxu0
    %v331 = vadd.f32 %v134, %v330
    %v332 = vpop.f32.mrb[0].mxu0
    %333 = vdwg.mxu0
    %v334 = vmax.f32 %v256, 0.0
    %v335 = vmax.f32 %v261, 0.0
    %v336 = vmax.f32 %v266, 0.0
    %v337 = vmax.f32 %v271, 0.0
    %v338 = vmax.f32 %v276, 0.0
    %v339 = vmax.f32 %v281, 0.0
    %v340 = vmax.f32 %v286, 0.0
    %v341 = vmax.f32 %v291, 0.0
    %v342 = vmax.f32 %v296, 0.0
    %v343 = vmax.f32 %v301, 0.0
    %v344 = vmax.f32 %v306, 0.0
    %v345 = vmax.f32 %v311, 0.0
    %v346 = vmax.f32 %v316, 0.0
    %v347 = vmax.f32 %v321, 0.0
    %v348 = vmax.f32 %v326, 0.0
    %v349 = vmax.f32 %v331, 0.0
    %v350 = vld [vmem:[%s3] sm:$0x1]
    %v351 = vld [vmem:[#allocation2] sm:$0x1]
    %353 = vset.pattern.permute.xlu0 0
    %354 = vperm.xlu0 %353, %v351
    %v355 = vpop.permute.xlu0 %354
    %v357 = vlaneseq
    %v358 = vshrl.u32 %v357, 7
    %v359 = vsub.s32 0, %v358
    %v360 = vrot.slane %v355, %v359
    %361 = vmatprep.subr.mxu0 0.0
    %362 = vmatpush1.msra.mxu0 %v334
    %363 = vmatprep.subr.mxu0 0.0
    %364 = vmatpush1.msra.mxu0 %v335
    %365 = vmatprep.subr.mxu0 0.0
    %366 = vmatpush1.msra.mxu0 %v336
    %367 = vmatprep.subr.mxu0 0.0
    %368 = vmatpush1.msra.mxu0 %v337
    %369 = vmatprep.subr.mxu0 0.0
    %370 = vmatpush1.msra.mxu0 %v338
    %371 = vmatprep.subr.mxu0 0.0
    %372 = vmatpush1.msra.mxu0 %v339
    %373 = vmatprep.subr.mxu0 0.0
    %374 = vmatpush1.msra.mxu0 %v340
    %375 = vmatprep.subr.mxu0 0.0
    %376 = vmatpush1.msra.mxu0 %v341
    %377 = vmatprep.subr.mxu0 0.0
    %378 = vmatpush1.msra.mxu0 %v342
    %379 = vmatprep.subr.mxu0 0.0
    %380 = vmatpush1.msra.mxu0 %v343
    %381 = vmatprep.subr.mxu0 0.0
    %382 = vmatpush1.msra.mxu0 %v344
    %383 = vmatprep.subr.mxu0 0.0
    %384 = vmatpush1.msra.mxu0 %v345
    %385 = vmatprep.subr.mxu0 0.0
    %386 = vmatpush1.msra.mxu0 %v346
    %387 = vmatprep.subr.mxu0 0.0
    %388 = vmatpush1.msra.mxu0 %v347
    %389 = vmatprep.subr.mxu0 0.0
    %390 = vmatpush1.msra.mxu0 %v348
    %391 = vmatprep.subr.mxu0 0.0
    %392 = vmatpush1.msra.mxu0 %v349
    %393 = vmatprep.subr.mxu0 0.0
    %394 = vmatpush1.msra.mxu0 0.0
    %395 = vmatprep.subr.mxu0 0.0
    %396 = vmatpush1.msra.mxu0 0.0
    %397 = vmatprep.subr.mxu0 0.0
    %398 = vmatpush1.msra.mxu0 0.0
    %399 = vmatprep.subr.mxu0 0.0
    %400 = vmatpush1.msra.mxu0 0.0
    %401 = vmatprep.subr.mxu0 0.0
    %402 = vmatpush1.msra.mxu0 0.0
    %403 = vmatprep.subr.mxu0 0.0
    %404 = vmatpush1.msra.mxu0 0.0
    %405 = vmatprep.subr.mxu0 0.0
    %406 = vmatpush1.msra.mxu0 0.0
    %407 = vmatprep.subr.mxu0 0.0
    %408 = vmatpush1.msra.mxu0 0.0
    %409 = vmatprep.subr.mxu0 0.0
    %410 = vmatpush1.msra.mxu0 0.0
    %411 = vmatprep.subr.mxu0 0.0
    %412 = vmatpush1.msra.mxu0 0.0
    %413 = vmatprep.subr.mxu0 0.0
    %414 = vmatpush1.msra.mxu0 0.0
    %415 = vmatprep.subr.mxu0 0.0
    %416 = vmatpush1.msra.mxu0 0.0
    %417 = vmatprep.subr.mxu0 0.0
    %418 = vmatpush1.msra.mxu0 0.0
    %419 = vmatprep.subr.mxu0 0.0
    %420 = vmatpush1.msra.mxu0 0.0
    %421 = vmatprep.subr.mxu0 0.0
    %422 = vmatpush1.msra.mxu0 0.0
    %423 = vmatprep.subr.mxu0 0.0
    %424 = vmatpush1.msra.mxu0 0.0
    %425 = vmatprep.mubr.f32.mxu0 0.0
    %426 = vmatmul.mubr.f32.gmra.mrb[0].mxu0 %v350
    %v427 = vpop.f32.mrb[0].mxu0
    %v428 = vadd.f32 %v360, %v427
    %v429 = vpop.f32.mrb[0].mxu0
    %430 = vdwg.mxu0
    %vm431 = vcmask 57344
    %432 = vst.msk [vmem:[#allocation3] sm:$0x1] %vm431, %v428
    // Predicated region
    $region22: #{deterministic_decoder.1} parent=1 // pred_check
      _
    $region23: #{deterministic_decoder.1} parent=1 // pred_check_branch
      %434 = sbr.rel (0) target = $region25
    $region24: #{deterministic_decoder.1} parent=1 // pred_region
      %s436 = ssub.s32 16, 16
      %437 = vsyncadd [#allocation4], %s436
      %s439 = sshll.u32 [#allocation3], 4
      %s440 = int_to_ptr.vmem [resolvable:$true] %s439
      %442 = dma.vmem_to_hbm [thread:$0]  %s440, 16, %s5, [#allocation4]
    $region25: #{deterministic_decoder.1} parent=1 // pred_fallthru
      _
    // Predicated region
    $region26: #{deterministic_decoder.1} parent=1 // pred_check
      _
    $region27: #{deterministic_decoder.1} parent=1 // pred_check_branch
      %444 = sbr.rel (0) target = $region29
    $region28: #{deterministic_decoder.1} parent=1 // pred_region
      %445 = dma.done [#allocation4], 16
    $region29: #{deterministic_decoder.1} parent=1 // pred_fallthru
      _
    %446 = vsyncpa [#allocation4], 1

</llo_original>
